<compile_context>
chip_gen: v7x
topology: tpu7x:2x2x1
jax: 0.10.0
libtpu: 0.0.40
codegen_flags: <defaults>
</compile_context>

<pallas_src>
import jax
import jax.numpy as jnp
from jax.experimental import pallas as pl
from jax.experimental.pallas import tpu as pltpu


def _mam_ta_kernel(x_ref, w1t_ref, b1_ref, w2t_ref, b2_ref, o_ref):
    """One (Bt, C, H*W) lane-dense block per grid step.

    x_ref  : (Bt, C, H*W) f32  — lane axis = H*W (dense, unmasked loads/stores)
    w1t/w2t: (W, W) fc weights, pre-transposed (y = v @ Wt + b)
    b1/b2  : (1, W)
    o_ref  : (Bt, C, H*W) f32  — aliased with the input in HBM
    """
    x = x_ref[...]                               # (Bt, C, HW)
    C = x.shape[1]
    HW = x.shape[2]
    W = w1t_ref.shape[0]
    H = HW // W
    inv_chw = 1.0 / float(C * H)

    # ---- pool over C: sublane reduce, stays lane-dense ----------------------
    sum_c = jnp.sum(x, axis=1)                   # (Bt, HW)
    max_c = jnp.max(x, axis=1)                   # (Bt, HW)

    # ---- pool over the H lane-groups: out[:, w] = reduce_h v[:, h*W + w] ----
    # Circular XLU rolls on a tiny (Bt, HW) vector; exact for any H (each roll
    # by h*W visits a distinct member of the stride-W lane group).
    sum_bw = sum_c
    max_bw = max_c
    for h in range(1, H):
        sum_bw = sum_bw + pltpu.roll(sum_c, shift=h * W, axis=1)
        max_bw = jnp.maximum(max_bw, pltpu.roll(max_c, shift=h * W, axis=1))
    sum_bw = sum_bw[:, :W]                       # (Bt, W)
    max_bw = max_bw[:, :W]                       # (Bt, W)
    avg_bw = sum_bw * inv_chw                    # AdaptiveAvgPool2d(1)

    # ---- fc1 / fc2 (Linear W->W) on the MXU, relu, sigmoid gate --------------
    a = jnp.dot(avg_bw, w1t_ref[...], preferred_element_type=jnp.float32) + b1_ref[...]
    m = jnp.dot(max_bw, w2t_ref[...], preferred_element_type=jnp.float32) + b2_ref[...]
    scale = jax.nn.sigmoid(jnp.maximum(a, 0.0) + jnp.maximum(m, 0.0))    # (Bt, W)

    # ---- expand per-w gate to the lane-dense H*W axis (exact replication) ----
    gate = jnp.concatenate([scale] * H, axis=-1)      # (Bt, HW); gate[:, h*W+w] = scale[:, w]

    # ---- lane-dense scale + store --------------------------------------------
    o_ref[...] = x * gate[:, None, :]


def mam_ta_forward(x, w1, b1, w2, b2, *, block_budget_bytes=2 << 20):
    """x: (B, C, H, W) f32.  w1, w2: (W, W) PyTorch-style (out, in).  b1, b2: (W,)."""
    B, C, H, W = x.shape
    assert w1.shape == (W, W) and w2.shape == (W, W), "fc in/out features must equal W"
    HW = H * W

    x = jnp.asarray(x, jnp.float32)
    w1t = jnp.asarray(w1, jnp.float32).T          # (in, out) so kernel does v @ w1t
    w2t = jnp.asarray(w2, jnp.float32).T
    b1r = jnp.asarray(b1, jnp.float32).reshape(1, W)
    b2r = jnp.asarray(b2, jnp.float32).reshape(1, W)

    # Lane-dense layout: fold (H, W) into one trailing axis (free adjacent-dim merge).
    x_flat = x.reshape(B, C, HW)

    # Block batching: amortize per-step overhead with multi-image blocks while
    # keeping 2x(in+out) double-buffering well inside the v7x 64 MiB VMEM, and
    # keeping at least a few grid steps so the pipeline / both v7x cores have work.
    per_image_bytes = C * HW * 4
    target_steps = min(B, 8)
    bt = max(1, min(block_budget_bytes // per_image_bytes, B // target_steps))
    while B % bt:
        bt -= 1
    # TODO(synk): if a single image ever exceeds the block budget, switch to a
    # C-tiled two-sweep pipeline (pool pass + scale pass) instead of one block.

    block_bytes = bt * per_image_bytes
    aux_bytes = (2 * W * W + 2 * W) * 4
    vmem_limit = int(min(max(4 * block_bytes + 4 * aux_bytes + (4 << 20), 16 << 20),
                         64 << 20))

    out_flat = pl.pallas_call(
        _mam_ta_kernel,
        out_shape=jax.ShapeDtypeStruct((B, C, HW), jnp.float32),
        grid_spec=pltpu.PrefetchScalarGridSpec(
            num_scalar_prefetch=0,
            grid=(B // bt,),
            in_specs=[
                pl.BlockSpec((bt, C, HW), lambda i: (i, 0, 0)),
                pl.BlockSpec((W, W), lambda i: (0, 0)),
                pl.BlockSpec((1, W), lambda i: (0, 0)),
                pl.BlockSpec((W, W), lambda i: (0, 0)),
                pl.BlockSpec((1, W), lambda i: (0, 0)),
            ],
            out_specs=pl.BlockSpec((bt, C, HW), lambda i: (i, 0, 0)),
        ),
        input_output_aliases={0: 0},   # every element of x is overwritten -> reuse its HBM
        compiler_params=pltpu.CompilerParams(
            dimension_semantics=("parallel",),
            vmem_limit_bytes=vmem_limit,
        ),
    )(x_flat, w1t, b1r, w2t, b2r)

    return out_flat.reshape(B, C, H, W)


def _reference(x, w1, b1, w2, b2):
    # pure-JAX reference mirroring the PyTorch module
    x_p = jnp.transpose(x, (0, 3, 2, 1))                    # (B, W, H, C)
    avg = jnp.mean(x_p, axis=(2, 3))                        # (B, W)
    mx = jnp.max(x_p, axis=(2, 3))                          # (B, W)
    a = jnp.maximum(avg @ w1.T + b1, 0.0)
    m = jnp.maximum(mx @ w2.T + b2, 0.0)
    scale = jax.nn.sigmoid(a + m)                           # (B, W)
    out_p = x_p * scale[:, :, None, None]
    return jnp.transpose(out_p, (0, 3, 2, 1))               # back to NCHW


if __name__ == "__main__":
    # Small shapes consistent with the module: the attention fc width equals W.
    B, C, H, W = 2, 4, 16, 16
    key = jax.random.PRNGKey(0)
    kx, k1, k2, k3, k4 = jax.random.split(key, 5)

    x = jax.random.normal(kx, (B, C, H, W), dtype=jnp.float32)

    # Deterministic Linear(W, W) params (uniform ~ PyTorch default bound 1/sqrt(W)).
    bound = 1.0 / float(W) ** 0.5
    w1 = jax.random.uniform(k1, (W, W), jnp.float32, -bound, bound)
    b1 = jax.random.uniform(k2, (W,), jnp.float32, -bound, bound)
    w2 = jax.random.uniform(k3, (W, W), jnp.float32, -bound, bound)
    b2 = jax.random.uniform(k4, (W,), jnp.float32, -bound, bound)

    fwd = jax.jit(mam_ta_forward)
    out = fwd(x, w1, b1, w2, b2)
    jax.block_until_ready(out)

    ref = _reference(x, w1, b1, w2, b2)
    assert out.shape == (B, C, H, W)
    assert jnp.allclose(out, ref, atol=1e-5, rtol=1e-5), "mismatch vs reference"

    print("KERNEL_OK")
</pallas_src>

<mosaic_0001>
module attributes {stable_mosaic.version = 11 : i64} {
  func.func @_mam_ta_kernel(%arg0: i32, %arg1: memref<1x4x256xf32, #tpu.memory_space<vmem>>, %arg2: memref<16x16xf32, #tpu.memory_space<vmem>>, %arg3: memref<1x16xf32, #tpu.memory_space<vmem>>, %arg4: memref<16x16xf32, #tpu.memory_space<vmem>>, %arg5: memref<1x16xf32, #tpu.memory_space<vmem>>, %arg6: memref<1x4x256xf32, #tpu.memory_space<vmem>>) attributes {dimension_semantics = [#tpu.dimension_semantics<parallel>], iteration_bounds = array<i64: 2>, scalar_prefetch = 0 : i64, scratch_operands = 0 : i64, tpu.core_type = #tpu.core_type<tc>, window_params = [{transform_indices = @transform_0, window_bounds = array<i64: 1, 4, 256>}, {pipeline_mode = #tpu.pipeline_mode<synchronous>, transform_indices = @transform_1, window_bounds = array<i64: 16, 16>}, {pipeline_mode = #tpu.pipeline_mode<synchronous>, transform_indices = @transform_2, window_bounds = array<i64: 1, 16>}, {pipeline_mode = #tpu.pipeline_mode<synchronous>, transform_indices = @transform_3, window_bounds = array<i64: 16, 16>}, {pipeline_mode = #tpu.pipeline_mode<synchronous>, transform_indices = @transform_4, window_bounds = array<i64: 1, 16>}, {transform_indices = @transform_5, window_bounds = array<i64: 1, 4, 256>}]} {
    %c0 = arith.constant 0 : index
    %c0_0 = arith.constant 0 : index
    %c0_1 = arith.constant 0 : index
    %0 = vector.load %arg1[%c0, %c0_0, %c0_1] : memref<1x4x256xf32, #tpu.memory_space<vmem>>, vector<1x4x256xf32>
    %cst = arith.constant dense<0.000000e+00> : vector<1x256xf32>
    %1 = vector.multi_reduction <add>, %0, %cst [1] : vector<1x4x256xf32> to vector<1x256xf32>
    %cst_2 = arith.constant dense<0xFF800000> : vector<1x256xf32>
    %2 = vector.multi_reduction <maximumf>, %0, %cst_2 [1] : vector<1x4x256xf32> to vector<1x256xf32>
    %c16_i32 = arith.constant 16 : i32
    %3 = tpu.dynamic_rotate %1 by %c16_i32 dim 1 : vector<1x256xf32>, i32 -> vector<1x256xf32>
    %4 = arith.addf %1, %3 : vector<1x256xf32>
    %c16_i32_3 = arith.constant 16 : i32
    %5 = tpu.dynamic_rotate %2 by %c16_i32_3 dim 1 : vector<1x256xf32>, i32 -> vector<1x256xf32>
    %6 = arith.maximumf %2, %5 : vector<1x256xf32>
    %c32_i32 = arith.constant 32 : i32
    %7 = tpu.dynamic_rotate %1 by %c32_i32 dim 1 : vector<1x256xf32>, i32 -> vector<1x256xf32>
    %8 = arith.addf %4, %7 : vector<1x256xf32>
    %c32_i32_4 = arith.constant 32 : i32
    %9 = tpu.dynamic_rotate %2 by %c32_i32_4 dim 1 : vector<1x256xf32>, i32 -> vector<1x256xf32>
    %10 = arith.maximumf %6, %9 : vector<1x256xf32>
    %c48_i32 = arith.constant 48 : i32
    %11 = tpu.dynamic_rotate %1 by %c48_i32 dim 1 : vector<1x256xf32>, i32 -> vector<1x256xf32>
    %12 = arith.addf %8, %11 : vector<1x256xf32>
    %c48_i32_5 = arith.constant 48 : i32
    %13 = tpu.dynamic_rotate %2 by %c48_i32_5 dim 1 : vector<1x256xf32>, i32 -> vector<1x256xf32>
    %14 = arith.maximumf %10, %13 : vector<1x256xf32>
    %c64_i32 = arith.constant 64 : i32
    %15 = tpu.dynamic_rotate %1 by %c64_i32 dim 1 : vector<1x256xf32>, i32 -> vector<1x256xf32>
    %16 = arith.addf %12, %15 : vector<1x256xf32>
    %c64_i32_6 = arith.constant 64 : i32
    %17 = tpu.dynamic_rotate %2 by %c64_i32_6 dim 1 : vector<1x256xf32>, i32 -> vector<1x256xf32>
    %18 = arith.maximumf %14, %17 : vector<1x256xf32>
    %c80_i32 = arith.constant 80 : i32
    %19 = tpu.dynamic_rotate %1 by %c80_i32 dim 1 : vector<1x256xf32>, i32 -> vector<1x256xf32>
    %20 = arith.addf %16, %19 : vector<1x256xf32>
    %c80_i32_7 = arith.constant 80 : i32
    %21 = tpu.dynamic_rotate %2 by %c80_i32_7 dim 1 : vector<1x256xf32>, i32 -> vector<1x256xf32>
    %22 = arith.maximumf %18, %21 : vector<1x256xf32>
    %c96_i32 = arith.constant 96 : i32
    %23 = tpu.dynamic_rotate %1 by %c96_i32 dim 1 : vector<1x256xf32>, i32 -> vector<1x256xf32>
    %24 = arith.addf %20, %23 : vector<1x256xf32>
    %c96_i32_8 = arith.constant 96 : i32
    %25 = tpu.dynamic_rotate %2 by %c96_i32_8 dim 1 : vector<1x256xf32>, i32 -> vector<1x256xf32>
    %26 = arith.maximumf %22, %25 : vector<1x256xf32>
    %c112_i32 = arith.constant 112 : i32
    %27 = tpu.dynamic_rotate %1 by %c112_i32 dim 1 : vector<1x256xf32>, i32 -> vector<1x256xf32>
    %28 = arith.addf %24, %27 : vector<1x256xf32>
    %c112_i32_9 = arith.constant 112 : i32
    %29 = tpu.dynamic_rotate %2 by %c112_i32_9 dim 1 : vector<1x256xf32>, i32 -> vector<1x256xf32>
    %30 = arith.maximumf %26, %29 : vector<1x256xf32>
    %c128_i32 = arith.constant 128 : i32
    %31 = tpu.dynamic_rotate %1 by %c128_i32 dim 1 : vector<1x256xf32>, i32 -> vector<1x256xf32>
    %32 = arith.addf %28, %31 : vector<1x256xf32>
    %c128_i32_10 = arith.constant 128 : i32
    %33 = tpu.dynamic_rotate %2 by %c128_i32_10 dim 1 : vector<1x256xf32>, i32 -> vector<1x256xf32>
    %34 = arith.maximumf %30, %33 : vector<1x256xf32>
    %c144_i32 = arith.constant 144 : i32
    %35 = tpu.dynamic_rotate %1 by %c144_i32 dim 1 : vector<1x256xf32>, i32 -> vector<1x256xf32>
    %36 = arith.addf %32, %35 : vector<1x256xf32>
    %c144_i32_11 = arith.constant 144 : i32
    %37 = tpu.dynamic_rotate %2 by %c144_i32_11 dim 1 : vector<1x256xf32>, i32 -> vector<1x256xf32>
    %38 = arith.maximumf %34, %37 : vector<1x256xf32>
    %c160_i32 = arith.constant 160 : i32
    %39 = tpu.dynamic_rotate %1 by %c160_i32 dim 1 : vector<1x256xf32>, i32 -> vector<1x256xf32>
    %40 = arith.addf %36, %39 : vector<1x256xf32>
    %c160_i32_12 = arith.constant 160 : i32
    %41 = tpu.dynamic_rotate %2 by %c160_i32_12 dim 1 : vector<1x256xf32>, i32 -> vector<1x256xf32>
    %42 = arith.maximumf %38, %41 : vector<1x256xf32>
    %c176_i32 = arith.constant 176 : i32
    %43 = tpu.dynamic_rotate %1 by %c176_i32 dim 1 : vector<1x256xf32>, i32 -> vector<1x256xf32>
    %44 = arith.addf %40, %43 : vector<1x256xf32>
    %c176_i32_13 = arith.constant 176 : i32
    %45 = tpu.dynamic_rotate %2 by %c176_i32_13 dim 1 : vector<1x256xf32>, i32 -> vector<1x256xf32>
    %46 = arith.maximumf %42, %45 : vector<1x256xf32>
    %c192_i32 = arith.constant 192 : i32
    %47 = tpu.dynamic_rotate %1 by %c192_i32 dim 1 : vector<1x256xf32>, i32 -> vector<1x256xf32>
    %48 = arith.addf %44, %47 : vector<1x256xf32>
    %c192_i32_14 = arith.constant 192 : i32
    %49 = tpu.dynamic_rotate %2 by %c192_i32_14 dim 1 : vector<1x256xf32>, i32 -> vector<1x256xf32>
    %50 = arith.maximumf %46, %49 : vector<1x256xf32>
    %c208_i32 = arith.constant 208 : i32
    %51 = tpu.dynamic_rotate %1 by %c208_i32 dim 1 : vector<1x256xf32>, i32 -> vector<1x256xf32>
    %52 = arith.addf %48, %51 : vector<1x256xf32>
    %c208_i32_15 = arith.constant 208 : i32
    %53 = tpu.dynamic_rotate %2 by %c208_i32_15 dim 1 : vector<1x256xf32>, i32 -> vector<1x256xf32>
    %54 = arith.maximumf %50, %53 : vector<1x256xf32>
    %c224_i32 = arith.constant 224 : i32
    %55 = tpu.dynamic_rotate %1 by %c224_i32 dim 1 : vector<1x256xf32>, i32 -> vector<1x256xf32>
    %56 = arith.addf %52, %55 : vector<1x256xf32>
    %c224_i32_16 = arith.constant 224 : i32
    %57 = tpu.dynamic_rotate %2 by %c224_i32_16 dim 1 : vector<1x256xf32>, i32 -> vector<1x256xf32>
    %58 = arith.maximumf %54, %57 : vector<1x256xf32>
    %c240_i32 = arith.constant 240 : i32
    %59 = tpu.dynamic_rotate %1 by %c240_i32 dim 1 : vector<1x256xf32>, i32 -> vector<1x256xf32>
    %60 = arith.addf %56, %59 : vector<1x256xf32>
    %c240_i32_17 = arith.constant 240 : i32
    %61 = tpu.dynamic_rotate %2 by %c240_i32_17 dim 1 : vector<1x256xf32>, i32 -> vector<1x256xf32>
    %62 = arith.maximumf %58, %61 : vector<1x256xf32>
    %63 = vector.extract_strided_slice %60 {offsets = [0, 0], sizes = [1, 16], strides = [1, 1]} : vector<1x256xf32> to vector<1x16xf32>
    %64 = vector.extract_strided_slice %62 {offsets = [0, 0], sizes = [1, 16], strides = [1, 1]} : vector<1x256xf32> to vector<1x16xf32>
    %cst_18 = arith.constant 1.562500e-02 : f32
    %65 = vector.broadcast %cst_18 : f32 to vector<1x16xf32>
    %66 = arith.mulf %63, %65 : vector<1x16xf32>
    %c0_19 = arith.constant 0 : index
    %c0_20 = arith.constant 0 : index
    %67 = vector.load %arg2[%c0_19, %c0_20] : memref<16x16xf32, #tpu.memory_space<vmem>>, vector<16x16xf32>
    %cst_21 = arith.constant dense<0.000000e+00> : vector<1x16xf32>
    %68 = tpu.matmul %66, %67, %cst_21 {dimension_numbers = #tpu.dot_dimension_numbers<[1], [0], [0], [1], [0, 0, 1, 1], [], []>} : vector<1x16xf32>, vector<16x16xf32>, vector<1x16xf32> -> vector<1x16xf32>
    %c0_22 = arith.constant 0 : index
    %c0_23 = arith.constant 0 : index
    %69 = vector.load %arg3[%c0_22, %c0_23] : memref<1x16xf32, #tpu.memory_space<vmem>>, vector<1x16xf32>
    %70 = arith.addf %68, %69 : vector<1x16xf32>
    %c0_24 = arith.constant 0 : index
    %c0_25 = arith.constant 0 : index
    %71 = vector.load %arg4[%c0_24, %c0_25] : memref<16x16xf32, #tpu.memory_space<vmem>>, vector<16x16xf32>
    %cst_26 = arith.constant dense<0.000000e+00> : vector<1x16xf32>
    %72 = tpu.matmul %64, %71, %cst_26 {dimension_numbers = #tpu.dot_dimension_numbers<[1], [0], [0], [1], [0, 0, 1, 1], [], []>} : vector<1x16xf32>, vector<16x16xf32>, vector<1x16xf32> -> vector<1x16xf32>
    %c0_27 = arith.constant 0 : index
    %c0_28 = arith.constant 0 : index
    %73 = vector.load %arg5[%c0_27, %c0_28] : memref<1x16xf32, #tpu.memory_space<vmem>>, vector<1x16xf32>
    %74 = arith.addf %72, %73 : vector<1x16xf32>
    %cst_29 = arith.constant 0.000000e+00 : f32
    %75 = vector.broadcast %cst_29 : f32 to vector<1x16xf32>
    %76 = arith.maximumf %70, %75 : vector<1x16xf32>
    %cst_30 = arith.constant 0.000000e+00 : f32
    %77 = vector.broadcast %cst_30 : f32 to vector<1x16xf32>
    %78 = arith.maximumf %74, %77 : vector<1x16xf32>
    %79 = arith.addf %76, %78 : vector<1x16xf32>
    %80 = arith.negf %79 : vector<1x16xf32>
    %81 = math.exp %80 : vector<1x16xf32>
    %cst_31 = arith.constant 1.000000e+00 : f32
    %82 = vector.broadcast %cst_31 : f32 to vector<1x16xf32>
    %83 = arith.addf %82, %81 : vector<1x16xf32>
    %84 = arith.divf %82, %83 : vector<1x16xf32>
    %85 = tpu.concatenate %84, %84, %84, %84, %84, %84, %84, %84, %84, %84, %84, %84, %84, %84, %84, %84 in 1 : vector<1x16xf32>, vector<1x16xf32>, vector<1x16xf32>, vector<1x16xf32>, vector<1x16xf32>, vector<1x16xf32>, vector<1x16xf32>, vector<1x16xf32>, vector<1x16xf32>, vector<1x16xf32>, vector<1x16xf32>, vector<1x16xf32>, vector<1x16xf32>, vector<1x16xf32>, vector<1x16xf32>, vector<1x16xf32> -> vector<1x256xf32>
    %86 = vector.shape_cast %85 : vector<1x256xf32> to vector<1x1x256xf32>
    %87 = vector.broadcast %86 : vector<1x1x256xf32> to vector<1x4x256xf32>
    %88 = arith.mulf %0, %87 : vector<1x4x256xf32>
    %c0_32 = arith.constant 0 : index
    %c0_33 = arith.constant 0 : index
    %c0_34 = arith.constant 0 : index
    %89 = vector.load %arg6[%c0_32, %c0_33, %c0_34] : memref<1x4x256xf32, #tpu.memory_space<vmem>>, vector<1x4x256xf32>
    tpu.vector_store %arg6[%c0_32, %c0_33, %c0_34], %88 {strides = array<i32>} : memref<1x4x256xf32, #tpu.memory_space<vmem>>, vector<1x4x256xf32>,
    return
  }
  func.func @transform_0(%arg0: i32) -> (i32, i32, i32) {
    %c0_i32 = arith.constant 0 : i32
    %c0_i32_0 = arith.constant 0 : i32
    %c0_i32_1 = arith.constant 0 : i32
    return %arg0, %c0_i32, %c0_i32_0 : i32, i32, i32
  }
  func.func @transform_1(%arg0: i32) -> (i32, i32) {
    %c0_i32 = arith.constant 0 : i32
    %c0_i32_0 = arith.constant 0 : i32
    %c0_i32_1 = arith.constant 0 : i32
    return %c0_i32, %c0_i32_0 : i32, i32
  }
  func.func @transform_2(%arg0: i32) -> (i32, i32) {
    %c0_i32 = arith.constant 0 : i32
    %c0_i32_0 = arith.constant 0 : i32
    %c0_i32_1 = arith.constant 0 : i32
    return %c0_i32, %c0_i32_0 : i32, i32
  }
  func.func @transform_3(%arg0: i32) -> (i32, i32) {
    %c0_i32 = arith.constant 0 : i32
    %c0_i32_0 = arith.constant 0 : i32
    %c0_i32_1 = arith.constant 0 : i32
    return %c0_i32, %c0_i32_0 : i32, i32
  }
  func.func @transform_4(%arg0: i32) -> (i32, i32) {
    %c0_i32 = arith.constant 0 : i32
    %c0_i32_0 = arith.constant 0 : i32
    %c0_i32_1 = arith.constant 0 : i32
    return %c0_i32, %c0_i32_0 : i32, i32
  }
  func.func @transform_5(%arg0: i32) -> (i32, i32, i32) {
    %c0_i32 = arith.constant 0 : i32
    %c0_i32_0 = arith.constant 0 : i32
    %c0_i32_1 = arith.constant 0 : i32
    return %arg0, %c0_i32, %c0_i32_0 : i32, i32, i32
  }
}

</mosaic_0001>

<llo_original>
// kernel: mam_ta_forward.1
$region0: #{mam_ta_forward.1}
  #allocation0 [shape = 'u32[]', space=smem, size = 0x4, offset = 0x4, fixed_abs, tag = 'smem constant byte address 0x4 - core index']
  #allocation1 [shape = 'u32[144,128]{1,0:T(1,128)}', space=vmem, size = 0x12000, scoped, tag = 'internal scratch']
  %s0 = inlined_call_operand.vmem [shape: f32[2,4,256], index: 0, kind: input, shape index: {}, may-alias: {0,5}]
  %s1 = inlined_call_operand.vmem [shape: f32[16,16], index: 1, kind: input, shape index: {}]
  %s2 = inlined_call_operand.vmem [shape: f32[1,16], index: 2, kind: input, shape index: {}]
  %s3 = inlined_call_operand.vmem [shape: f32[16,16], index: 3, kind: input, shape index: {}]
  %s4 = inlined_call_operand.vmem [shape: f32[1,16], index: 4, kind: input, shape index: {}]
  %s5 = inlined_call_operand.vmem [shape: f32[2,4,256], index: 5, kind: output, shape index: {}, may-alias: {0,5}]
  %s6 = sld [smem:[#allocation0]]
  $region53: #{mam_ta_forward.1} parent=0
    _
  %s8 = ssub.s32 1, %s6
  %s9 = scalar_select 0, %s8, %s6
  loop: start=0, step=1, limit=4
  $region2: #{mam_ta_forward.1} parent=0 // loop_pre_header
    _
  $region3: #{mam_ta_forward.1} parent=0 // loop_header
    %s11 = sphi 0, %s15
    %p12 = scmp.ge.s32.totalorder %s11, 4
    %s21 = sphi 0, %s23
    %s24 = sphi 0, %s21
    %s25 = sphi 0, %s24
    %s41 = sphi 0, %s25
    %s45 = sphi 0, %s45
    %s47 = sphi 0, %s45
    %s48 = sphi 0, %s47
    %s62 = sphi 0, %s48
    %s66 = sphi 0, %s66
    %s68 = sphi 0, %s66
    %s69 = sphi 0, %s68
    %s83 = sphi 0, %s69
    %s87 = sphi 0, %s87
    %s89 = sphi 0, %s87
    %s90 = sphi 0, %s89
    %s104 = sphi 0, %s90
    %s108 = sphi 0, %s108
    %s110 = sphi 0, %s108
    %s111 = sphi 0, %s110
    %s125 = sphi 0, %s111
    %s131 = sphi 0, %s133
    %s134 = sphi 0, %s131
    %s135 = sphi 0, %s134
    %s151 = sphi 0, %s135
  $region4: #{mam_ta_forward.1} parent=0 // loop_header_branch
    %14 = sbr.rel (%p12) target = $region8
  $region5: #{mam_ta_forward.1} parent=0 // loop_body
    %s16 = ssub.s32 %s11, 1
    %s17 = ssub.s32 %s11, 2
    %s18 = sadd.s32 %s11, 1
    %s19 = ssub.s32 %s11, %s18
    %p20 = scmp.eq.s32.totalorder %s19, 0
    %s22 = sadd.s32 %s21, 1
    %s23 = scalar_select %p20, %s21, %s22
    %p26 = pneg %p20
    %p27 = scmp.eq.s32.totalorder %s11, 1
    %p28 = por %p26, %p27
    %p29 = scmp.ne.s32.totalorder %s21, %s24
    %p30 = scmp.eq.s32.totalorder %s11, 0
    %p31 = por %p29, %p30
    %p32 = scmp.ne.s32.totalorder %s21, %s24
    %p33 = scmp.eq.s32.totalorder %s16, 1
    %p34 = por %p32, %p33
    %p35 = scmp.ne.s32.totalorder %s24, %s25
    %p36 = scmp.eq.s32.totalorder %s16, 0
    %p37 = por %p35, %p36
    %p38 = scmp.ne.s32.totalorder %s24, %s25
    %p39 = scmp.eq.s32.totalorder %s17, 1
    %p40 = por %p38, %p39
    %p42 = scmp.ne.s32.totalorder %s25, %s41
    %p43 = scmp.eq.s32.totalorder %s17, 0
    %p44 = por %p42, %p43
    %s46 = sadd.s32 %s45, 1
    %p49 = scmp.eq.s32.totalorder %s11, 1
    %p50 = scmp.ne.s32.totalorder %s45, %s47
    %p51 = scmp.eq.s32.totalorder %s11, 0
    %p52 = por %p50, %p51
    %p53 = scmp.ne.s32.totalorder %s45, %s47
    %p54 = scmp.eq.s32.totalorder %s16, 1
    %p55 = por %p53, %p54
    %p56 = scmp.ne.s32.totalorder %s47, %s48
    %p57 = scmp.eq.s32.totalorder %s16, 0
    %p58 = por %p56, %p57
    %p59 = scmp.ne.s32.totalorder %s47, %s48
    %p60 = scmp.eq.s32.totalorder %s17, 1
    %p61 = por %p59, %p60
    %p63 = scmp.ne.s32.totalorder %s48, %s62
    %p64 = scmp.eq.s32.totalorder %s17, 0
    %p65 = por %p63, %p64
    %s67 = sadd.s32 %s66, 1
    %p70 = scmp.eq.s32.totalorder %s11, 1
    %p71 = scmp.ne.s32.totalorder %s66, %s68
    %p72 = scmp.eq.s32.totalorder %s11, 0
    %p73 = por %p71, %p72
    %p74 = scmp.ne.s32.totalorder %s66, %s68
    %p75 = scmp.eq.s32.totalorder %s16, 1
    %p76 = por %p74, %p75
    %p77 = scmp.ne.s32.totalorder %s68, %s69
    %p78 = scmp.eq.s32.totalorder %s16, 0
    %p79 = por %p77, %p78
    %p80 = scmp.ne.s32.totalorder %s68, %s69
    %p81 = scmp.eq.s32.totalorder %s17, 1
    %p82 = por %p80, %p81
    %p84 = scmp.ne.s32.totalorder %s69, %s83
    %p85 = scmp.eq.s32.totalorder %s17, 0
    %p86 = por %p84, %p85
    %s88 = sadd.s32 %s87, 1
    %p91 = scmp.eq.s32.totalorder %s11, 1
    %p92 = scmp.ne.s32.totalorder %s87, %s89
    %p93 = scmp.eq.s32.totalorder %s11, 0
    %p94 = por %p92, %p93
    %p95 = scmp.ne.s32.totalorder %s87, %s89
    %p96 = scmp.eq.s32.totalorder %s16, 1
    %p97 = por %p95, %p96
    %p98 = scmp.ne.s32.totalorder %s89, %s90
    %p99 = scmp.eq.s32.totalorder %s16, 0
    %p100 = por %p98, %p99
    %p101 = scmp.ne.s32.totalorder %s89, %s90
    %p102 = scmp.eq.s32.totalorder %s17, 1
    %p103 = por %p101, %p102
    %p105 = scmp.ne.s32.totalorder %s90, %s104
    %p106 = scmp.eq.s32.totalorder %s17, 0
    %p107 = por %p105, %p106
    %s109 = sadd.s32 %s108, 1
    %p112 = scmp.eq.s32.totalorder %s11, 1
    %p113 = scmp.ne.s32.totalorder %s108, %s110
    %p114 = scmp.eq.s32.totalorder %s11, 0
    %p115 = por %p113, %p114
    %p116 = scmp.ne.s32.totalorder %s108, %s110
    %p117 = scmp.eq.s32.totalorder %s16, 1
    %p118 = por %p116, %p117
    %p119 = scmp.ne.s32.totalorder %s110, %s111
    %p120 = scmp.eq.s32.totalorder %s16, 0
    %p121 = por %p119, %p120
    %p122 = scmp.ne.s32.totalorder %s110, %s111
    %p123 = scmp.eq.s32.totalorder %s17, 1
    %p124 = por %p122, %p123
    %p126 = scmp.ne.s32.totalorder %s111, %s125
    %p127 = scmp.eq.s32.totalorder %s17, 0
    %p128 = por %p126, %p127
    %s129 = ssub.s32 %s11, %s18
    %p130 = scmp.eq.s32.totalorder %s129, 0
    %s132 = sadd.s32 %s131, 1
    %s133 = scalar_select %p130, %s131, %s132
    %p136 = pneg %p130
    %p137 = scmp.eq.s32.totalorder %s11, 1
    %p138 = por %p136, %p137
    %p139 = scmp.ne.s32.totalorder %s131, %s134
    %p140 = scmp.eq.s32.totalorder %s11, 0
    %p141 = por %p139, %p140
    %p142 = scmp.ne.s32.totalorder %s131, %s134
    %p143 = scmp.eq.s32.totalorder %s16, 1
    %p144 = por %p142, %p143
    %p145 = scmp.ne.s32.totalorder %s134, %s135
    %p146 = scmp.eq.s32.totalorder %s16, 0
    %p147 = por %p145, %p146
    %p148 = scmp.ne.s32.totalorder %s134, %s135
    %p149 = scmp.eq.s32.totalorder %s17, 1
    %p150 = por %p148, %p149
    %p152 = scmp.ne.s32.totalorder %s135, %s151
    %p153 = scmp.eq.s32.totalorder %s17, 0
    %p154 = por %p152, %p153
    %p155 = scmp.le.s32.totalorder 1, %s11
    %p156 = scmp.lt.s32.totalorder %s11, 3
    %p157 = pnand %p155, %p156
    %p158 = pneg %p157
    // Predicated region
    $region9: #{mam_ta_forward.1} parent=5 // pred_check
      _
    $region10: #{mam_ta_forward.1} parent=5 // pred_check_branch
      %160 = sbr.rel (%p157) target = $region12
    $region11: #{mam_ta_forward.1} parent=5 // pred_region
      %s161 = ssub.s32 %s11, 1
      // Predicated region
      $region13: #{mam_ta_forward.1} parent=11 // pred_check
        %p162 = pneg %p58
      $region14: #{mam_ta_forward.1} parent=11 // pred_check_branch
        %164 = sbr.rel (%p162) target = $region16
      $region15: #{mam_ta_forward.1} parent=11 // pred_region
        _
      $region16: #{mam_ta_forward.1} parent=11 // pred_fallthru
        _
      // Predicated region
      $region17: #{mam_ta_forward.1} parent=11 // pred_check
        %p165 = pneg %p79
      $region18: #{mam_ta_forward.1} parent=11 // pred_check_branch
        %167 = sbr.rel (%p165) target = $region20
      $region19: #{mam_ta_forward.1} parent=11 // pred_region
        _
      $region20: #{mam_ta_forward.1} parent=11 // pred_fallthru
        _
      // Predicated region
      $region21: #{mam_ta_forward.1} parent=11 // pred_check
        %p168 = pneg %p100
      $region22: #{mam_ta_forward.1} parent=11 // pred_check_branch
        %170 = sbr.rel (%p168) target = $region24
      $region23: #{mam_ta_forward.1} parent=11 // pred_region
        _
      $region24: #{mam_ta_forward.1} parent=11 // pred_fallthru
        _
      // Predicated region
      $region25: #{mam_ta_forward.1} parent=11 // pred_check
        %p171 = pneg %p121
      $region26: #{mam_ta_forward.1} parent=11 // pred_check_branch
        %173 = sbr.rel (%p171) target = $region28
      $region27: #{mam_ta_forward.1} parent=11 // pred_region
        _
      $region28: #{mam_ta_forward.1} parent=11 // pred_fallthru
        _
    $region12: #{mam_ta_forward.1} parent=5 // pred_fallthru
      _
    %p174 = scmp.lt.s32.totalorder %s11, 2
    // Predicated region
    $region29: #{mam_ta_forward.1} parent=5 // pred_check
      %p175 = pneg %p174
    $region30: #{mam_ta_forward.1} parent=5 // pred_check_branch
      %177 = sbr.rel (%p175) target = $region32
    $region31: #{mam_ta_forward.1} parent=5 // pred_region
      // Predicated region
      $region33: #{mam_ta_forward.1} parent=31 // pred_check
        %p178 = pneg %p31
      $region34: #{mam_ta_forward.1} parent=31 // pred_check_branch
        %180 = sbr.rel (%p178) target = $region36
      $region35: #{mam_ta_forward.1} parent=31 // pred_region
        %p181 = scmp.lt.s32.totalorder %s11, 1
        %s182 = scalar_select %p181, %s11, 1
        %s183 = smul.addr %s182, 2
        %s184 = smul.addr %s183, 4
        %s185 = scalar_lea.vmem %s0, %s184
      $region36: #{mam_ta_forward.1} parent=31 // pred_fallthru
        _
    $region32: #{mam_ta_forward.1} parent=5 // pred_fallthru
      _
    %p186 = scmp.le.s32.totalorder 1, %s11
    %p187 = scmp.lt.s32.totalorder %s11, 3
    %p188 = pnand %p186, %p187
    %p189 = pneg %p188
    // Predicated region
    $region37: #{mam_ta_forward.1} parent=5 // pred_check
      _
    $region38: #{mam_ta_forward.1} parent=5 // pred_check_branch
      %191 = sbr.rel (%p188) target = $region40
    $region39: #{mam_ta_forward.1} parent=5 // pred_region
      %s192 = ssub.s32 %s11, 1
      %p193 = scmp.lt.s32.totalorder %s16, 1
      %s194 = scalar_select %p193, %s16, 1
      %s195 = smul.addr %s194, 2
      %s196 = smul.addr %s195, 4
      %s197 = scalar_lea.vmem %s0, %s196
      %p198 = pneg %p37
      %p199 = pneg %p34
      %p200 = pneg %p58
      %p201 = pneg %p55
      %p202 = pneg %p79
      %p203 = pneg %p76
      %p204 = pneg %p100
      %p205 = pneg %p97
      %p206 = pneg %p121
      %p207 = pneg %p118
      %p208 = pneg %p147
      %p209 = pneg %p144
      %p210 = scmp.lt.s32.totalorder %s16, 1
      %s211 = scalar_select %p210, %s16, 1
      %s212 = smul.addr %s211, 2
      %s213 = smul.addr %s212, 4
      %s214 = scalar_lea.vmem %s5, %s213
      %p215 = scmp.lt.s32.totalorder %s16, 1
      %s216 = scalar_select %p215, %s16, 1
      %s217 = smul.addr %s216, 2
      %s218 = smul.addr %s217, 4
      %s219 = scalar_lea.vmem %s0, %s218
      %p220 = scmp.lt.s32.totalorder %s16, 1
      %s221 = scalar_select %p220, %s16, 1
      %s222 = smul.addr %s221, 2
      %s223 = smul.addr %s222, 4
      %s224 = scalar_lea.vmem %s5, %s223
      %v225 = vld [vmem:[%s219] sm:$0xff]
      %v227 = vcombine.high %v225, %v225
      %vm229 = vcmask 1043456
      %v230 = vsel %vm229, %v225, 0.0
      %v231 = vrot.slane %v230, 4
      %v232 = vadd.f32 %v230, %v231
      %v233 = vrot.slane %v232, 2
      %v234 = vadd.f32 %v232, %v233
      %v235 = vrot.slane %v234, 1
      %v236 = vadd.f32 %v234, %v235
      %v237 = vsel %vm229, %v227, 0.0
      %v238 = vrot.slane %v237, 4
      %v239 = vadd.f32 %v237, %v238
      %v240 = vrot.slane %v239, 2
      %v241 = vadd.f32 %v239, %v240
      %v242 = vrot.slane %v241, 1
      %v243 = vadd.f32 %v241, %v242
      %v244 = vsel %vm229, %v225, -inf
      %v245 = vrot.slane %v244, 4
      %v246 = vmax.f32 %v244, %v245
      %v247 = vrot.slane %v246, 2
      %v248 = vmax.f32 %v246, %v247
      %v249 = vrot.slane %v248, 1
      %v250 = vmax.f32 %v248, %v249
      %v251 = vsel %vm229, %v227, -inf
      %v252 = vrot.slane %v251, 4
      %v253 = vmax.f32 %v251, %v252
      %v254 = vrot.slane %v253, 2
      %v255 = vmax.f32 %v253, %v254
      %v256 = vrot.slane %v255, 1
      %v257 = vmax.f32 %v255, %v256
      %258 = vrot.lane.b32.xlu0 %v236, 16
      %v259 = vpop.permute.xlu0 %258
      %260 = vrot.lane.b32.xlu0 %v243, 16
      %v261 = vpop.permute.xlu0 %260
      %v262 = vlaneseq
      %v263 = vand.u32 %v262, 127
      %vm264 = vcmp.lt.s32.totalorder %v263, 16
      %v265 = vsel %vm264, %v261, %v259
      %v266 = vadd.f32 %v236, %v265
      %267 = vrot.lane.b32.xlu0 %v250, 16
      %v268 = vpop.permute.xlu0 %267
      %269 = vrot.lane.b32.xlu0 %v257, 16
      %v270 = vpop.permute.xlu0 %269
      %v271 = vsel %vm264, %v270, %v268
      %v272 = vmax.f32 %v250, %v271
      %273 = vrot.lane.b32.xlu0 %v236, 32
      %v274 = vpop.permute.xlu0 %273
      %275 = vrot.lane.b32.xlu0 %v243, 32
      %v276 = vpop.permute.xlu0 %275
      %vm277 = vcmp.lt.s32.totalorder %v263, 32
      %v278 = vsel %vm277, %v276, %v274
      %v279 = vadd.f32 %v266, %v278
      %280 = vrot.lane.b32.xlu0 %v250, 32
      %v281 = vpop.permute.xlu0 %280
      %282 = vrot.lane.b32.xlu0 %v257, 32
      %v283 = vpop.permute.xlu0 %282
      %v284 = vsel %vm277, %v283, %v281
      %v285 = vmax.f32 %v272, %v284
      %286 = vrot.lane.b32.xlu0 %v236, 48
      %v287 = vpop.permute.xlu0 %286
      %288 = vrot.lane.b32.xlu0 %v243, 48
      %v289 = vpop.permute.xlu0 %288
      %vm290 = vcmp.lt.s32.totalorder %v263, 48
      %v291 = vsel %vm290, %v289, %v287
      %v292 = vadd.f32 %v279, %v291
      %293 = vrot.lane.b32.xlu0 %v250, 48
      %v294 = vpop.permute.xlu0 %293
      %295 = vrot.lane.b32.xlu0 %v257, 48
      %v296 = vpop.permute.xlu0 %295
      %v297 = vsel %vm290, %v296, %v294
      %v298 = vmax.f32 %v285, %v297
      %299 = vrot.lane.b32.xlu0 %v236, 64
      %v300 = vpop.permute.xlu0 %299
      %301 = vrot.lane.b32.xlu0 %v243, 64
      %v302 = vpop.permute.xlu0 %301
      %vm303 = vcmp.lt.s32.totalorder %v263, 64
      %v304 = vsel %vm303, %v302, %v300
      %v305 = vadd.f32 %v292, %v304
      %306 = vrot.lane.b32.xlu0 %v250, 64
      %v307 = vpop.permute.xlu0 %306
      %308 = vrot.lane.b32.xlu0 %v257, 64
      %v309 = vpop.permute.xlu0 %308
      %v310 = vsel %vm303, %v309, %v307
      %v311 = vmax.f32 %v298, %v310
      %312 = vrot.lane.b32.xlu0 %v236, 80
      %v313 = vpop.permute.xlu0 %312
      %314 = vrot.lane.b32.xlu0 %v243, 80
      %v315 = vpop.permute.xlu0 %314
      %vm316 = vcmp.lt.s32.totalorder %v263, 80
      %v317 = vsel %vm316, %v315, %v313
      %v318 = vadd.f32 %v305, %v317
      %319 = vrot.lane.b32.xlu0 %v250, 80
      %v320 = vpop.permute.xlu0 %319
      %321 = vrot.lane.b32.xlu0 %v257, 80
      %v322 = vpop.permute.xlu0 %321
      %v323 = vsel %vm316, %v322, %v320
      %v324 = vmax.f32 %v311, %v323
      %325 = vrot.lane.b32.xlu0 %v236, 96
      %v326 = vpop.permute.xlu0 %325
      %327 = vrot.lane.b32.xlu0 %v243, 96
      %v328 = vpop.permute.xlu0 %327
      %vm329 = vcmp.lt.s32.totalorder %v263, 96
      %v330 = vsel %vm329, %v328, %v326
      %v331 = vadd.f32 %v318, %v330
      %332 = vrot.lane.b32.xlu0 %v250, 96
      %v333 = vpop.permute.xlu0 %332
      %334 = vrot.lane.b32.xlu0 %v257, 96
      %v335 = vpop.permute.xlu0 %334
      %v336 = vsel %vm329, %v335, %v333
      %v337 = vmax.f32 %v324, %v336
      %338 = vrot.lane.b32.xlu0 %v236, 112
      %v339 = vpop.permute.xlu0 %338
      %340 = vrot.lane.b32.xlu0 %v243, 112
      %v341 = vpop.permute.xlu0 %340
      %vm342 = vcmp.lt.s32.totalorder %v263, 112
      %v343 = vsel %vm342, %v341, %v339
      %v344 = vadd.f32 %v331, %v343
      %345 = vrot.lane.b32.xlu0 %v250, 112
      %v346 = vpop.permute.xlu0 %345
      %347 = vrot.lane.b32.xlu0 %v257, 112
      %v348 = vpop.permute.xlu0 %347
      %v349 = vsel %vm342, %v348, %v346
      %v350 = vmax.f32 %v337, %v349
      %v351 = vadd.f32 %v344, %v243
      %v352 = vmax.f32 %v350, %v257
      %v353 = vsel %vm264, %v259, %v261
      %v354 = vadd.f32 %v351, %v353
      %v355 = vsel %vm264, %v268, %v270
      %v356 = vmax.f32 %v352, %v355
      %v357 = vsel %vm277, %v274, %v276
      %v358 = vadd.f32 %v354, %v357
      %v359 = vsel %vm277, %v281, %v283
      %v360 = vmax.f32 %v356, %v359
      %v361 = vsel %vm290, %v287, %v289
      %v362 = vadd.f32 %v358, %v361
      %v363 = vsel %vm290, %v294, %v296
      %v364 = vmax.f32 %v360, %v363
      %v365 = vsel %vm303, %v300, %v302
      %v366 = vadd.f32 %v362, %v365
      %v367 = vsel %vm303, %v307, %v309
      %v368 = vmax.f32 %v364, %v367
      %v369 = vsel %vm316, %v313, %v315
      %v370 = vadd.f32 %v366, %v369
      %v371 = vsel %vm316, %v320, %v322
      %v372 = vmax.f32 %v368, %v371
      %v373 = vsel %vm329, %v326, %v328
      %v374 = vadd.f32 %v370, %v373
      %v375 = vsel %vm329, %v333, %v335
      %v376 = vmax.f32 %v372, %v375
      %v377 = vsel %vm342, %v339, %v341
      %v378 = vadd.f32 %v374, %v377
      %v379 = vsel %vm342, %v346, %v348
      %v380 = vmax.f32 %v376, %v379
      %v381 = vmul.f32 %v378, 0.015625
      %v382 = vld [vmem:[%s1] sm:$0xff]
      %v383 = vld [vmem:[%s1 + $0x8] sm:$0xff]
      %v384 = vld [vmem:[%s2] sm:$0x1]
      %vm385 = vcmask 130048
      %v387 = vsel %vm385, %v381, 0
      %389 = vmatprep.subr.mxu0 0.0
      %390 = vmatpush1.msra.mxu0 %v382
      %391 = vmatprep.subr.mxu0 0.0
      %392 = vmatpush1.msra.mxu0 %v383
      %393 = vmatprep.subr.mxu0 0.0
      %394 = vmatpush1.msra.mxu0 0.0
      %395 = vmatprep.subr.mxu0 0.0
      %396 = vmatpush1.msra.mxu0 0.0
      %397 = vmatprep.subr.mxu0 0.0
      %398 = vmatpush1.msra.mxu0 0.0
      %399 = vmatprep.subr.mxu0 0.0
      %400 = vmatpush1.msra.mxu0 0.0
      %401 = vmatprep.subr.mxu0 0.0
      %402 = vmatpush1.msra.mxu0 0.0
      %403 = vmatprep.subr.mxu0 0.0
      %404 = vmatpush1.msra.mxu0 0.0
      %405 = vmatprep.subr.mxu0 0.0
      %406 = vmatpush1.msra.mxu0 0.0
      %407 = vmatprep.subr.mxu0 0.0
      %408 = vmatpush1.msra.mxu0 0.0
      %409 = vmatprep.subr.mxu0 0.0
      %410 = vmatpush1.msra.mxu0 0.0
      %411 = vmatprep.subr.mxu0 0.0
      %412 = vmatpush1.msra.mxu0 0.0
      %413 = vmatprep.subr.mxu0 0.0
      %414 = vmatpush1.msra.mxu0 0.0
      %415 = vmatprep.subr.mxu0 0.0
      %416 = vmatpush1.msra.mxu0 0.0
      %417 = vmatprep.subr.mxu0 0.0
      %418 = vmatpush1.msra.mxu0 0.0
      %419 = vmatprep.subr.mxu0 0.0
      %420 = vmatpush1.msra.mxu0 0.0
      %421 = vmatprep.subr.mxu0 0.0
      %422 = vmatpush1.msra.mxu0 0.0
      %423 = vmatprep.subr.mxu0 0.0
      %424 = vmatpush1.msra.mxu0 0.0
      %425 = vmatprep.subr.mxu0 0.0
      %426 = vmatpush1.msra.mxu0 0.0
      %427 = vmatprep.subr.mxu0 0.0
      %428 = vmatpush1.msra.mxu0 0.0
      %429 = vmatprep.subr.mxu0 0.0
      %430 = vmatpush1.msra.mxu0 0.0
      %431 = vmatprep.subr.mxu0 0.0
      %432 = vmatpush1.msra.mxu0 0.0
      %433 = vmatprep.subr.mxu0 0.0
      %434 = vmatpush1.msra.mxu0 0.0
      %435 = vmatprep.subr.mxu0 0.0
      %436 = vmatpush1.msra.mxu0 0.0
      %437 = vmatprep.subr.mxu0 0.0
      %438 = vmatpush1.msra.mxu0 0.0
      %439 = vmatprep.subr.mxu0 0.0
      %440 = vmatpush1.msra.mxu0 0.0
      %441 = vmatprep.subr.mxu0 0.0
      %442 = vmatpush1.msra.mxu0 0.0
      %443 = vmatprep.subr.mxu0 0.0
      %444 = vmatpush1.msra.mxu0 0.0
      %445 = vmatprep.subr.mxu0 0.0
      %446 = vmatpush1.msra.mxu0 0.0
      %447 = vmatprep.subr.mxu0 0.0
      %448 = vmatpush1.msra.mxu0 0.0
      %449 = vmatprep.subr.mxu0 0.0
      %450 = vmatpush1.msra.mxu0 0.0
      %451 = vmatprep.subr.mxu0 0.0
      %452 = vmatpush1.msra.mxu0 0.0
      %453 = vmatprep.mubr.f32.mxu0 0.0
      %454 = vmatmul.mubr.f32.gmra.mrb[0].mxu0 %v387
      %v455 = vpop.f32.mrb[0].mxu0
      %v456 = vadd.f32 %v384, %v455
      %v457 = vpop.f32.mrb[0].mxu0
      %458 = vdwg.mxu0
      %v459 = vld [vmem:[%s3] sm:$0xff]
      %v460 = vld [vmem:[%s3 + $0x8] sm:$0xff]
      %v461 = vld [vmem:[%s4] sm:$0x1]
      %v463 = vsel %vm385, %v380, 0
      %465 = vmatprep.subr.mxu0 0.0
      %466 = vmatpush1.msra.mxu0 %v459
      %467 = vmatprep.subr.mxu0 0.0
      %468 = vmatpush1.msra.mxu0 %v460
      %469 = vmatprep.subr.mxu0 0.0
      %470 = vmatpush1.msra.mxu0 0.0
      %471 = vmatprep.subr.mxu0 0.0
      %472 = vmatpush1.msra.mxu0 0.0
      %473 = vmatprep.subr.mxu0 0.0
      %474 = vmatpush1.msra.mxu0 0.0
      %475 = vmatprep.subr.mxu0 0.0
      %476 = vmatpush1.msra.mxu0 0.0
      %477 = vmatprep.subr.mxu0 0.0
      %478 = vmatpush1.msra.mxu0 0.0
      %479 = vmatprep.subr.mxu0 0.0
      %480 = vmatpush1.msra.mxu0 0.0
      %481 = vmatprep.subr.mxu0 0.0
      %482 = vmatpush1.msra.mxu0 0.0
      %483 = vmatprep.subr.mxu0 0.0
      %484 = vmatpush1.msra.mxu0 0.0
      %485 = vmatprep.subr.mxu0 0.0
      %486 = vmatpush1.msra.mxu0 0.0
      %487 = vmatprep.subr.mxu0 0.0
      %488 = vmatpush1.msra.mxu0 0.0
      %489 = vmatprep.subr.mxu0 0.0
      %490 = vmatpush1.msra.mxu0 0.0
      %491 = vmatprep.subr.mxu0 0.0
      %492 = vmatpush1.msra.mxu0 0.0
      %493 = vmatprep.subr.mxu0 0.0
      %494 = vmatpush1.msra.mxu0 0.0
      %495 = vmatprep.subr.mxu0 0.0
      %496 = vmatpush1.msra.mxu0 0.0
      %497 = vmatprep.subr.mxu0 0.0
      %498 = vmatpush1.msra.mxu0 0.0
      %499 = vmatprep.subr.mxu0 0.0
      %500 = vmatpush1.msra.mxu0 0.0
      %501 = vmatprep.subr.mxu0 0.0
      %502 = vmatpush1.msra.mxu0 0.0
      %503 = vmatprep.subr.mxu0 0.0
      %504 = vmatpush1.msra.mxu0 0.0
      %505 = vmatprep.subr.mxu0 0.0
      %506 = vmatpush1.msra.mxu0 0.0
      %507 = vmatprep.subr.mxu0 0.0
      %508 = vmatpush1.msra.mxu0 0.0
      %509 = vmatprep.subr.mxu0 0.0
      %510 = vmatpush1.msra.mxu0 0.0
      %511 = vmatprep.subr.mxu0 0.0
      %512 = vmatpush1.msra.mxu0 0.0
      %513 = vmatprep.subr.mxu0 0.0
      %514 = vmatpush1.msra.mxu0 0.0
      %515 = vmatprep.subr.mxu0 0.0
      %516 = vmatpush1.msra.mxu0 0.0
      %517 = vmatprep.subr.mxu0 0.0
      %518 = vmatpush1.msra.mxu0 0.0
      %519 = vmatprep.subr.mxu0 0.0
      %520 = vmatpush1.msra.mxu0 0.0
      %521 = vmatprep.subr.mxu0 0.0
      %522 = vmatpush1.msra.mxu0 0.0
      %523 = vmatprep.subr.mxu0 0.0
      %524 = vmatpush1.msra.mxu0 0.0
      %525 = vmatprep.subr.mxu0 0.0
      %526 = vmatpush1.msra.mxu0 0.0
      %527 = vmatprep.subr.mxu0 0.0
      %528 = vmatpush1.msra.mxu0 0.0
      %529 = vmatprep.mubr.f32.mxu0 0.0
      %530 = vmatmul.mubr.f32.gmra.mrb[0].mxu0 %v463
      %v531 = vpop.f32.mrb[0].mxu0
      %v532 = vadd.f32 %v461, %v531
      %v533 = vpop.f32.mrb[0].mxu0
      %534 = vdwg.mxu0
      %v535 = vmax.f32 %v456, 0.0
      %v536 = vmax.f32 %v532, 0.0
      %v537 = vadd.f32 %v535, %v536
      %v538 = vxor.u32 %v537, 2147483648
      %v539 = vmul.f32 %v538, 1.442695
      %v540 = vpow.pop %v539
      %v541 = vadd.f32 %v540, 1.0
      %v542 = vrcp.pop %v541
      %v543 = vmul.f32 1.0, %v542
      %545 = vrot.lane.b32.xlu0 %v543, 16
      %v546 = vpop.permute.xlu0 %545
      %548 = vrot.lane.b32.xlu0 %v543, 32
      %v549 = vpop.permute.xlu0 %548
      %551 = vrot.lane.b32.xlu0 %v543, 48
      %v552 = vpop.permute.xlu0 %551
      %554 = vrot.lane.b32.xlu0 %v543, 64
      %v555 = vpop.permute.xlu0 %554
      %557 = vrot.lane.b32.xlu0 %v543, 80
      %v558 = vpop.permute.xlu0 %557
      %560 = vrot.lane.b32.xlu0 %v543, 96
      %v561 = vpop.permute.xlu0 %560
      %563 = vrot.lane.b32.xlu0 %v543, 112
      %v564 = vpop.permute.xlu0 %563
      %v566 = vsel %vm385, %v543, %v546
      %vm567 = vcmask 261120
      %v568 = vsel %vm567, %v566, %v549
      %vm569 = vcmask 392192
      %v570 = vsel %vm569, %v568, %v552
      %vm571 = vcmask 523264
      %v572 = vsel %vm571, %v570, %v555
      %vm573 = vcmask 654336
      %v574 = vsel %vm573, %v572, %v558
      %vm575 = vcmask 785408
      %v576 = vsel %vm575, %v574, %v561
      %vm577 = vcmask 916480
      %v578 = vsel %vm577, %v576, %v564
      %v579 = vlaneseq
      %v580 = vshrl.u32 %v579, 7
      %v581 = vsub.s32 0, %v580
      %v582 = vrot.slane %v578, %v581
      %v584 = vcombine.low %v582, %v582
      %v586 = vmul.f32 %v225, %v584
      %587 = vst [vmem:[%s224] sm:$0xff] %v586
      %p588 = scmp.lt.s32.totalorder %s16, 1
      %s589 = scalar_select %p588, %s16, 1
      %s590 = smul.addr %s589, 2
      %s591 = smul.addr %s590, 4
      %s592 = scalar_lea.vmem %s5, %s591
      // Predicated region
      $region41: #{mam_ta_forward.1} parent=39 // pred_check
        %p593 = pneg %p144
      $region42: #{mam_ta_forward.1} parent=39 // pred_check_branch
        %595 = sbr.rel (%p593) target = $region44
      $region43: #{mam_ta_forward.1} parent=39 // pred_region
        _
      $region44: #{mam_ta_forward.1} parent=39 // pred_fallthru
        _
    $region40: #{mam_ta_forward.1} parent=5 // pred_fallthru
      _
    %p596 = scmp.le.s32.totalorder 2, %s11
    // Predicated region
    $region45: #{mam_ta_forward.1} parent=5 // pred_check
      %p597 = pneg %p596
    $region46: #{mam_ta_forward.1} parent=5 // pred_check_branch
      %599 = sbr.rel (%p597) target = $region48
    $region47: #{mam_ta_forward.1} parent=5 // pred_region
      %s600 = ssub.s32 %s11, 2
      // Predicated region
      $region49: #{mam_ta_forward.1} parent=47 // pred_check
        %p601 = pneg %p150
      $region50: #{mam_ta_forward.1} parent=47 // pred_check_branch
        %603 = sbr.rel (%p601) target = $region52
      $region51: #{mam_ta_forward.1} parent=47 // pred_region
        %p604 = scmp.lt.s32.totalorder %s17, 1
        %s605 = scalar_select %p604, %s17, 1
        %s606 = smul.addr %s605, 2
        %s607 = smul.addr %s606, 4
        %s608 = scalar_lea.vmem %s5, %s607
      $region52: #{mam_ta_forward.1} parent=47 // pred_fallthru
        _
    $region48: #{mam_ta_forward.1} parent=5 // pred_fallthru
      _
  $region6: #{mam_ta_forward.1} parent=0 // loop_footer
    %s15 = sadd.s32 1, %s11
  $region7: #{mam_ta_forward.1} parent=0 // loop_footer_branch
    %10 = sbr.rel target = $region3
  $region8: #{mam_ta_forward.1} parent=0 // loop_exit
    _

</llo_original>
